<compile_context>
chip_gen: v7x
topology: tpu7x:2x2x1
jax: 0.10.0
libtpu: 0.0.40
codegen_flags: <defaults>
</compile_context>

<pallas_src>
import functools

import jax
import jax.numpy as jnp
from jax import lax
from jax.experimental import pallas as pl
from jax.experimental.pallas import tpu as pltpu


def _round_up(x, m):
    return ((x + m - 1) // m) * m


def _recip(x):
    # EUP approximate reciprocal + one Newton-Raphson refinement (~f32 exact).
    r = pl.reciprocal(x, approx=True)
    return r * (2.0 - x * r)


def _tile_loss(ev, lab):
    """error + variance for one (TM, C) tile, computed in f32."""
    alphas = ev + 1.0
    strength = jnp.sum(alphas, axis=-1, keepdims=True)          # (TM, 1)
    probabilities = alphas * _recip(strength)                   # (TM, C)
    error = (lab - probabilities) ** 2
    variance = probabilities * (1.0 - probabilities) * _recip(strength + 1.0)
    return error + variance                                     # (TM, C)


def _fold_rows(tile):
    """(TM, C) -> (8, C) via element-wise vreg adds (no cross-lane reduce)."""
    rows, c = tile.shape
    return jnp.sum(tile.reshape(rows // 8, 8, c), axis=0)


def _accumulate_and_finalize(tile, out_ref, acc_ref, *, num_rows, tile_rows,
                             steps, needs_mask):
    if needs_mask:
        base = (pl.program_id(0) * steps + pl.program_id(1)) * tile_rows
        boundary = base + tile_rows > num_rows

        @pl.when(jnp.logical_not(boundary))
        def _():
            acc_ref[...] += _fold_rows(tile)

        @pl.when(boundary)
        def _():
            rows = base + lax.broadcasted_iota(jnp.int32, (tile_rows, 1), 0)
            acc_ref[...] += _fold_rows(jnp.where(rows < num_rows, tile, 0.0))
    else:
        acc_ref[...] += _fold_rows(tile)

    @pl.when(pl.program_id(1) == steps - 1)
    def _():
        total = jnp.sum(acc_ref[...])
        # Lane-dense (1, 8, 128) partial-sum block (scalar broadcast).
        out_ref[...] = jnp.zeros(out_ref.shape, jnp.float32) + total


def _ssbr_dense_kernel(ev_ref, lab_ref, out_ref, acc_ref, *,
                       num_rows, tile_rows, steps, needs_mask):
    @pl.when(pl.program_id(1) == 0)
    def _():
        acc_ref[...] = jnp.zeros_like(acc_ref)

    ev = ev_ref[...].astype(jnp.float32)
    lab = lab_ref[...].astype(jnp.float32)
    tile = _tile_loss(ev, lab)
    _accumulate_and_finalize(tile, out_ref, acc_ref, num_rows=num_rows,
                             tile_rows=tile_rows, steps=steps,
                             needs_mask=needs_mask)


def _ssbr_ids_kernel(ev_ref, ids_ref, out_ref, acc_ref, *,
                     num_rows, tile_rows, steps, needs_mask):
    @pl.when(pl.program_id(1) == 0)
    def _():
        acc_ref[...] = jnp.zeros_like(acc_ref)

    ev = ev_ref[...].astype(jnp.float32)
    ids = ids_ref[...]                                           # (TM, 1) int32
    classes = lax.broadcasted_iota(jnp.int32, ev.shape, 1)       # (TM, C)
    lab = (classes == ids).astype(jnp.float32)                   # in-kernel one-hot
    tile = _tile_loss(ev, lab)
    _accumulate_and_finalize(tile, out_ref, acc_ref, num_rows=num_rows,
                             tile_rows=tile_rows, steps=steps,
                             needs_mask=needs_mask)


_LANE = 128


def _vmem_capacity_bytes():
    try:
        return int(pltpu.get_tpu_info().vmem_capacity_bytes)
    except Exception:
        return 64 * 1024 * 1024          # conservative (v7x-sized) fallback


def _default_num_splits():
    # 2 TensorCores per Pallas device on megacore chips; 1 on v5e/v6e.
    try:
        kind = jax.devices()[0].device_kind.lower()
    except Exception:
        return 1
    return 2 if any(tag in kind for tag in ("v4", "v5p", "v7")) else 1


def _launch(kernel_fn, evidences, second, tile_rows, num_splits):
    n, c = evidences.shape
    second_cols = second.shape[1]
    assert n >= 1 and c >= 1

    if num_splits is None:
        num_splits = _default_num_splits()
    num_splits = max(1, int(num_splits))

    ev_item = jnp.dtype(evidences.dtype).itemsize
    sec_item = jnp.dtype(second.dtype).itemsize

    def block_bytes(rows, cols, itemsize):
        # VMEM footprint with lane padding to 128.
        return rows * _round_up(cols, _LANE) * itemsize

    # Double-buffered inputs (actual dtypes, lane-padded) per row of tile.
    per_row = 2 * (block_bytes(1, c, ev_item)
                   + block_bytes(1, second_cols, sec_item))
    # (8, C) f32 accumulator + double-buffered (1, 8, 128) f32 output block.
    fixed = block_bytes(8, c, 4) + 2 * block_bytes(8, _LANE, 4)

    cap = _vmem_capacity_bytes()
    budget = min(max(cap // 3, 16 * 1024 * 1024), 48 * 1024 * 1024)

    # Sublane multiple: 8 for 4-byte inputs, 16 if any input is 2-byte, etc.
    sub_mult = max(8, 32 // min(ev_item, sec_item))

    max_tile = max(sub_mult, ((budget - fixed) // per_row) // sub_mult * sub_mult)
    rows_per_split_min = _round_up(-(-n // num_splits), sub_mult)
    tile_rows = max(sub_mult, min(_round_up(tile_rows, sub_mult), max_tile,
                                  rows_per_split_min))

    rows_per_split = _round_up(-(-n // num_splits), tile_rows)
    padded_n = rows_per_split * num_splits
    steps = rows_per_split // tile_rows
    needs_mask = padded_n != n

    if needs_mask:
        pad = padded_n - n
        evidences = jnp.pad(evidences, ((0, pad), (0, 0)))
        second = jnp.pad(second, ((0, pad), (0, 0)))

    working_set = fixed + per_row * tile_rows
    vmem_limit = int(min(cap, max(2 * working_set, 32 * 1024 * 1024)))

    kernel = functools.partial(kernel_fn, num_rows=n, tile_rows=tile_rows,
                               steps=steps, needs_mask=needs_mask)

    partials = pl.pallas_call(
        kernel,
        out_shape=jax.ShapeDtypeStruct((num_splits, 8, _LANE), jnp.float32),
        grid_spec=pltpu.PrefetchScalarGridSpec(
            num_scalar_prefetch=0,
            grid=(num_splits, steps),
            in_specs=[
                pl.BlockSpec((tile_rows, c), lambda s, i: (s * steps + i, 0)),
                pl.BlockSpec((tile_rows, second_cols),
                             lambda s, i: (s * steps + i, 0)),
            ],
            out_specs=pl.BlockSpec((1, 8, _LANE), lambda s, i: (s, 0, 0)),
            scratch_shapes=[pltpu.VMEM((8, c), jnp.float32)],
        ),
        compiler_params=pltpu.CompilerParams(
            dimension_semantics=("parallel", "arbitrary"),
            vmem_limit_bytes=vmem_limit,
        ),
    )(evidences, second)

    return jnp.sum(partials[:, 0, 0]) / jnp.float32(n)


def ss_bayes_risk_loss(evidences, labels, *, tile_rows=2048, num_splits=None):
    """Faithful port of SSBayesRiskLoss.forward: labels is dense (n, c)."""
    assert evidences.ndim == 2 and evidences.shape == labels.shape
    return _launch(_ssbr_dense_kernel, evidences, labels, tile_rows, num_splits)


def ss_bayes_risk_loss_from_ids(evidences, label_ids, *, tile_rows=2048,
                                num_splits=None):
    """Fast path for one-hot labels: streams int32 ids (halves HBM traffic)."""
    n, c = evidences.shape
    ids = label_ids.reshape(n, 1).astype(jnp.int32)
    return _launch(_ssbr_ids_kernel, evidences, ids, tile_rows, num_splits)


def _reference(evidences, labels):
    evidences = evidences.astype(jnp.float32)
    labels = labels.astype(jnp.float32)
    alphas = evidences + 1.0
    strength = jnp.sum(alphas, axis=-1, keepdims=True)
    probabilities = alphas / strength
    error = (labels - probabilities) ** 2
    variance = probabilities * (1.0 - probabilities) / (strength + 1.0)
    loss = jnp.sum(error + variance, axis=-1, keepdims=True)
    return jnp.mean(loss)


if __name__ == "__main__":
    key = jax.random.PRNGKey(0)
    k_ev, k_lab = jax.random.split(key)

    batch, num_classes = 16, 32
    # Evidences are non-negative (Dirichlet evidence); labels are one-hot.
    evidences = jax.nn.softplus(
        jax.random.normal(k_ev, (batch, num_classes), dtype=jnp.float32))
    label_ids = jax.random.randint(k_lab, (batch,), 0, num_classes)
    labels = jax.nn.one_hot(label_ids, num_classes, dtype=jnp.float32)

    ref = _reference(evidences, labels)

    out_dense = jax.block_until_ready(ss_bayes_risk_loss(evidences, labels))
    assert jnp.allclose(out_dense, ref, rtol=1e-5, atol=1e-6), (out_dense, ref)

    out_ids = jax.block_until_ready(
        ss_bayes_risk_loss_from_ids(evidences, label_ids))
    assert jnp.allclose(out_ids, ref, rtol=1e-5, atol=1e-6), (out_ids, ref)

    # Non-divisible batch exercises the boundary-tile masking path.
    nb = 13
    ref_odd = _reference(evidences[:nb], labels[:nb])
    out_odd = jax.block_until_ready(
        ss_bayes_risk_loss(evidences[:nb], labels[:nb]))
    assert jnp.allclose(out_odd, ref_odd, rtol=1e-5, atol=1e-6), (out_odd, ref_odd)
    out_odd_ids = jax.block_until_ready(
        ss_bayes_risk_loss_from_ids(evidences[:nb], label_ids[:nb]))
    assert jnp.allclose(out_odd_ids, ref_odd, rtol=1e-5, atol=1e-6), (
        out_odd_ids, ref_odd)

    # Explicit 2-split run (covers the megacore split path on any chip,
    # including a split that is partly / fully padding).
    out_split = jax.block_until_ready(
        ss_bayes_risk_loss(evidences[:nb], labels[:nb], num_splits=2))
    assert jnp.allclose(out_split, ref_odd, rtol=1e-5, atol=1e-6), (
        out_split, ref_odd)

    # bf16 inputs stream half the bytes; kernel upcasts to f32 internally.
    ev_bf16 = evidences.astype(jnp.bfloat16)
    lab_bf16 = labels.astype(jnp.bfloat16)
    ref_bf16 = _reference(ev_bf16, lab_bf16)
    out_bf16 = jax.block_until_ready(ss_bayes_risk_loss(ev_bf16, lab_bf16))
    assert jnp.allclose(out_bf16, ref_bf16, rtol=1e-5, atol=1e-6), (
        out_bf16, ref_bf16)

    print("KERNEL_OK")
</pallas_src>

<mosaic_0001>
module attributes {stable_mosaic.version = 11 : i64} {
  func.func @_ssbr_dense_kernel(%arg0: i32, %arg1: i32, %arg2: memref<16x32xf32, #tpu.memory_space<vmem>>, %arg3: memref<16x32xf32, #tpu.memory_space<vmem>>, %arg4: memref<1x8x128xf32, #tpu.memory_space<vmem>>, %arg5: memref<8x32xf32, #tpu.memory_space<vmem>>) attributes {dimension_semantics = [#tpu.dimension_semantics<parallel>, #tpu.dimension_semantics<arbitrary>], iteration_bounds = array<i64: 1, 1>, scalar_prefetch = 0 : i64, scratch_operands = 1 : i64, tpu.core_type = #tpu.core_type<tc>, window_params = [{transform_indices = @transform_0, window_bounds = array<i64: 16, 32>}, {transform_indices = @transform_1, window_bounds = array<i64: 16, 32>}, {transform_indices = @transform_2, window_bounds = array<i64: 1, 8, 128>}]} {
    %c0_i32 = arith.constant 0 : i32
    %0 = arith.cmpi eq, %arg1, %c0_i32 : i32
    %1 = arith.extui %0 : i1 to i32
    %c0_i32_0 = arith.constant 0 : i32
    %2 = arith.cmpi ne, %1, %c0_i32_0 : i32
    scf.if %2 {
      %cst_16 = arith.constant 0.000000e+00 : f32
      %39 = vector.broadcast %cst_16 : f32 to vector<8x32xf32>
      %c0_17 = arith.constant 0 : index
      %c0_18 = arith.constant 0 : index
      %40 = vector.load %arg5[%c0_17, %c0_18] : memref<8x32xf32, #tpu.memory_space<vmem>>, vector<8x32xf32>
      tpu.vector_store %arg5[%c0_17, %c0_18], %39 {strides = array<i32>} : memref<8x32xf32, #tpu.memory_space<vmem>>, vector<8x32xf32>,
    } else {
    }
    %c0 = arith.constant 0 : index
    %c0_1 = arith.constant 0 : index
    %3 = vector.load %arg2[%c0, %c0_1] : memref<16x32xf32, #tpu.memory_space<vmem>>, vector<16x32xf32>
    %c0_2 = arith.constant 0 : index
    %c0_3 = arith.constant 0 : index
    %4 = vector.load %arg3[%c0_2, %c0_3] : memref<16x32xf32, #tpu.memory_space<vmem>>, vector<16x32xf32>
    %cst = arith.constant 1.000000e+00 : f32
    %5 = vector.broadcast %cst : f32 to vector<16x32xf32>
    %6 = arith.addf %3, %5 : vector<16x32xf32>
    %cst_4 = arith.constant dense<0.000000e+00> : vector<16xf32>
    %7 = vector.multi_reduction <add>, %6, %cst_4 [1] : vector<16x32xf32> to vector<16xf32>
    %8 = vector.shape_cast %7 : vector<16xf32> to vector<16x1xf32>
    %9 = tpu.reciprocal %8 {approx = true} : vector<16x1xf32> -> vector<16x1xf32>
    %10 = arith.mulf %8, %9 : vector<16x1xf32>
    %cst_5 = arith.constant 2.000000e+00 : f32
    %11 = vector.broadcast %cst_5 : f32 to vector<16x1xf32>
    %12 = arith.subf %11, %10 : vector<16x1xf32>
    %13 = arith.mulf %9, %12 : vector<16x1xf32>
    %14 = vector.broadcast %13 : vector<16x1xf32> to vector<16x32xf32>
    %15 = arith.mulf %6, %14 : vector<16x32xf32>
    %16 = arith.subf %4, %15 : vector<16x32xf32>
    %17 = arith.mulf %16, %16 : vector<16x32xf32>
    %cst_6 = arith.constant 1.000000e+00 : f32
    %18 = vector.broadcast %cst_6 : f32 to vector<16x32xf32>
    %19 = arith.subf %18, %15 : vector<16x32xf32>
    %20 = arith.mulf %15, %19 : vector<16x32xf32>
    %cst_7 = arith.constant 1.000000e+00 : f32
    %21 = vector.broadcast %cst_7 : f32 to vector<16x1xf32>
    %22 = arith.addf %8, %21 : vector<16x1xf32>
    %23 = tpu.reciprocal %22 {approx = true} : vector<16x1xf32> -> vector<16x1xf32>
    %24 = arith.mulf %22, %23 : vector<16x1xf32>
    %cst_8 = arith.constant 2.000000e+00 : f32
    %25 = vector.broadcast %cst_8 : f32 to vector<16x1xf32>
    %26 = arith.subf %25, %24 : vector<16x1xf32>
    %27 = arith.mulf %23, %26 : vector<16x1xf32>
    %28 = vector.broadcast %27 : vector<16x1xf32> to vector<16x32xf32>
    %29 = arith.mulf %20, %28 : vector<16x32xf32>
    %30 = arith.addf %17, %29 : vector<16x32xf32>
    %c0_9 = arith.constant 0 : index
    %c0_10 = arith.constant 0 : index
    %31 = vector.load %arg5[%c0_9, %c0_10] : memref<8x32xf32, #tpu.memory_space<vmem>>, vector<8x32xf32>
    %32 = vector.shape_cast %30 : vector<16x32xf32> to vector<2x8x32xf32>
    %cst_11 = arith.constant dense<0.000000e+00> : vector<8x32xf32>
    %33 = vector.multi_reduction <add>, %32, %cst_11 [0] : vector<2x8x32xf32> to vector<8x32xf32>
    %34 = arith.addf %31, %33 : vector<8x32xf32>
    %c0_12 = arith.constant 0 : index
    %c0_13 = arith.constant 0 : index
    %35 = vector.load %arg5[%c0_12, %c0_13] : memref<8x32xf32, #tpu.memory_space<vmem>>, vector<8x32xf32>
    tpu.vector_store %arg5[%c0_12, %c0_13], %34 {strides = array<i32>} : memref<8x32xf32, #tpu.memory_space<vmem>>, vector<8x32xf32>,
    %c0_i32_14 = arith.constant 0 : i32
    %36 = arith.cmpi eq, %arg1, %c0_i32_14 : i32
    %37 = arith.extui %36 : i1 to i32
    %c0_i32_15 = arith.constant 0 : i32
    %38 = arith.cmpi ne, %37, %c0_i32_15 : i32
    scf.if %38 {
      %c0_16 = arith.constant 0 : index
      %c0_17 = arith.constant 0 : index
      %39 = vector.load %arg5[%c0_16, %c0_17] : memref<8x32xf32, #tpu.memory_space<vmem>>, vector<8x32xf32>
      %40 = vector.shape_cast %39 : vector<8x32xf32> to vector<1x8x32xf32>
      %cst_18 = arith.constant dense<0.000000e+00> : vector<1xf32>
      %41 = vector.multi_reduction <add>, %40, %cst_18 [1, 2] : vector<1x8x32xf32> to vector<1xf32>
      %42 = vector.shape_cast %41 : vector<1xf32> to vector<1x1x1xf32>
      %43 = vector.extract %42[0, 0, 0] : f32 from vector<1x1x1xf32>
      %cst_19 = arith.constant 0.000000e+00 : f32
      %44 = vector.broadcast %cst_19 : f32 to vector<1x8x128xf32>
      %45 = vector.broadcast %43 : f32 to vector<1x8x128xf32>
      %46 = arith.addf %44, %45 : vector<1x8x128xf32>
      %c0_20 = arith.constant 0 : index
      %c0_21 = arith.constant 0 : index
      %c0_22 = arith.constant 0 : index
      %47 = vector.load %arg4[%c0_20, %c0_21, %c0_22] : memref<1x8x128xf32, #tpu.memory_space<vmem>>, vector<1x8x128xf32>
      tpu.vector_store %arg4[%c0_20, %c0_21, %c0_22], %46 {strides = array<i32>} : memref<1x8x128xf32, #tpu.memory_space<vmem>>, vector<1x8x128xf32>,
    } else {
    }
    return
  }
  func.func @transform_0(%arg0: i32, %arg1: i32) -> (i32, i32) {
    %c1_i32 = arith.constant 1 : i32
    %0 = arith.muli %arg0, %c1_i32 : i32
    %1 = arith.addi %0, %arg1 : i32
    %c0_i32 = arith.constant 0 : i32
    %c0_i32_0 = arith.constant 0 : i32
    return %1, %c0_i32 : i32, i32
  }
  func.func @transform_1(%arg0: i32, %arg1: i32) -> (i32, i32) {
    %c1_i32 = arith.constant 1 : i32
    %0 = arith.muli %arg0, %c1_i32 : i32
    %1 = arith.addi %0, %arg1 : i32
    %c0_i32 = arith.constant 0 : i32
    %c0_i32_0 = arith.constant 0 : i32
    return %1, %c0_i32 : i32, i32
  }
  func.func @transform_2(%arg0: i32, %arg1: i32) -> (i32, i32, i32) {
    %c0_i32 = arith.constant 0 : i32
    %c0_i32_0 = arith.constant 0 : i32
    %c0_i32_1 = arith.constant 0 : i32
    return %arg0, %c0_i32, %c0_i32_0 : i32, i32, i32
  }
}

</mosaic_0001>

<llo_original>
// kernel: tpu_custom_call.1
$region0: #{tpu_custom_call.1}
  #allocation0 [shape = 'u32[]', space=smem, size = 0x4, offset = 0x4, fixed_abs, tag = 'smem constant byte address 0x4 - core index']
  #allocation1 [shape = 'u32[144,128]{1,0:T(1,128)}', space=vmem, size = 0x12000, scoped, tag = 'internal scratch']
  #allocation2 [shape = 'f32[8,32]{1,0:T(8,128)}', space=vmem, size = 0x1000, scoped, tag = 'scratch operand']
  %s0 = inlined_call_operand.hbm [shape: f32[16,32], index: 0, kind: input, shape index: {}]
  %s1 = inlined_call_operand.hbm [shape: f32[16,32], index: 1, kind: input, shape index: {}]
  %s2 = inlined_call_operand.hbm [shape: f32[1,8,128], index: 2, kind: output, shape index: {}]
  %s3 = sld [smem:[#allocation0]]
  $region34: #{tpu_custom_call.1} parent=0
    _
  %s5 = ssub.s32 1, %s3
  %s6 = scalar_select 0, %s5, %s3
  $region1: #{tpu_custom_call.1} parent=0
    #allocation3 [shape = 'u8[8192]{0}', space=vmem, size = 0x2000, scoped, tag = 'input window, operand 0, single buffered']
    #allocation4 [shape = 's32[1]{0}', space=sflag, size = 0x4, scoped, tag = 'scoped memory for tpu_custom_call.1']
    #allocation5 [shape = 's32[1]{0}', space=sflag, size = 0x4, scoped, tag = 'scoped memory for tpu_custom_call.1']
    #allocation6 [shape = 'u8[8192]{0}', space=vmem, size = 0x2000, scoped, tag = 'input window, operand 1, single buffered']
    #allocation7 [shape = 's32[1]{0}', space=sflag, size = 0x4, scoped, tag = 'scoped memory for tpu_custom_call.1']
    #allocation8 [shape = 'u8[4096]{0}', space=vmem, size = 0x1000, scoped, tag = 'output window, operand 0, single buffered']
    %7 = vsyncpa [#allocation4], 0
    %8 = vsyncpa [#allocation7], 0
    %9 = vsyncpa [#allocation5], 0
    // Predicated region
    $region2: #{tpu_custom_call.1} parent=1 // pred_check
      _
    $region3: #{tpu_custom_call.1} parent=1 // pred_check_branch
      %11 = sbr.rel (0) target = $region5
    $region4: #{tpu_custom_call.1} parent=1 // pred_region
      %s12 = sadd.s32 0, 0
      %s13 = smul.u32 2, %s12
      %s15 = ssub.s32 256, 256
      %16 = vsyncadd [#allocation4], %s15
      %s17 = smul.addr %s13, 128
      %s18 = scalar_lea.hbm %s0, %s17
      %s19 = sshll.u32 [#allocation3], 4
      %s20 = int_to_ptr.vmem [resolvable:$true] %s19
      %25 = dma.hbm_to_vmem [thread:$0]  %s18, 256, %s20, [#allocation4], 128, 128, 8
    $region5: #{tpu_custom_call.1} parent=1 // pred_fallthru
      _
    // Predicated region
    $region6: #{tpu_custom_call.1} parent=1 // pred_check
      _
    $region7: #{tpu_custom_call.1} parent=1 // pred_check_branch
      %27 = sbr.rel (0) target = $region9
    $region8: #{tpu_custom_call.1} parent=1 // pred_region
      %s28 = sadd.s32 0, 0
      %s29 = smul.u32 2, %s28
      %s31 = ssub.s32 256, 256
      %32 = vsyncadd [#allocation7], %s31
      %s33 = smul.addr %s29, 128
      %s34 = scalar_lea.hbm %s1, %s33
      %s35 = sshll.u32 [#allocation6], 4
      %s36 = int_to_ptr.vmem [resolvable:$true] %s35
      %41 = dma.hbm_to_vmem [thread:$0]  %s34, 256, %s36, [#allocation7], 128, 128, 8
    $region9: #{tpu_custom_call.1} parent=1 // pred_fallthru
      _
    // Predicated region
    $region10: #{tpu_custom_call.1} parent=1 // pred_check
      _
    $region11: #{tpu_custom_call.1} parent=1 // pred_check_branch
      %43 = sbr.rel (0) target = $region13
    $region12: #{tpu_custom_call.1} parent=1 // pred_region
      %44 = dma.done [#allocation4], 256
    $region13: #{tpu_custom_call.1} parent=1 // pred_fallthru
      _
    // Predicated region
    $region14: #{tpu_custom_call.1} parent=1 // pred_check
      _
    $region15: #{tpu_custom_call.1} parent=1 // pred_check_branch
      %46 = sbr.rel (0) target = $region17
    $region16: #{tpu_custom_call.1} parent=1 // pred_region
      %47 = dma.done [#allocation7], 256
    $region17: #{tpu_custom_call.1} parent=1 // pred_fallthru
      _
    %s48 = sadd.s32 0, 0
    %s49 = smul.u32 2, %s48
    %s50 = sadd.s32 0, 0
    %s51 = smul.u32 2, %s50
    %p52 = scmp.eq.s32.totalorder 0, 0
    // Predicated region
    $region18: #{tpu_custom_call.1} parent=1 // pred_check
      %p53 = pneg %p52
    $region19: #{tpu_custom_call.1} parent=1 // pred_check_branch
      %55 = sbr.rel (%p53) target = $region21
    $region20: #{tpu_custom_call.1} parent=1 // pred_region
      %vm56 = vcmask 261120
      %57 = vst.msk [vmem:[#allocation2] sm:$0xff] %vm56, 0.0
    $region21: #{tpu_custom_call.1} parent=1 // pred_fallthru
      _
    %v58 = vld [vmem:[#allocation3] sm:$0xff]
    %v59 = vld [vmem:[#allocation3 + $0x8] sm:$0xff]
    %v60 = vld [vmem:[#allocation6] sm:$0xff]
    %v61 = vld [vmem:[#allocation6 + $0x8] sm:$0xff]
    %v62 = vadd.f32 %v58, 1.0
    %v63 = vadd.f32 %v59, 1.0
    %vm64 = vcmask 261120
    %v65 = vsel %vm64, %v62, 0.0
    %66 = vadd.xlane.f32.xlu0 %v65
    %v67 = vpop.xlane.xlu0 %66
    %v68 = vsel %vm64, %v63, 0.0
    %69 = vadd.xlane.f32.xlu0 %v68
    %v70 = vpop.xlane.xlu0 %69
    %v71 = vrcp.pop %v67
    %v72 = vrcp.pop %v70
    %v73 = vmul.f32 %v67, %v71
    %v74 = vmul.f32 %v70, %v72
    %v75 = vsub.f32 2.0, %v73
    %v76 = vsub.f32 2.0, %v74
    %v77 = vmul.f32 %v71, %v75
    %v78 = vmul.f32 %v72, %v76
    %v79 = vmul.f32 %v62, %v77
    %v80 = vmul.f32 %v63, %v78
    %v81 = vsub.f32 %v60, %v79
    %v82 = vsub.f32 %v61, %v80
    %v83 = vmul.f32 %v81, %v81
    %v84 = vmul.f32 %v82, %v82
    %v85 = vsub.f32 1.0, %v79
    %v86 = vsub.f32 1.0, %v80
    %v87 = vmul.f32 %v79, %v85
    %v88 = vmul.f32 %v80, %v86
    %v89 = vadd.f32 %v67, 1.0
    %v90 = vadd.f32 %v70, 1.0
    %v91 = vrcp.pop %v89
    %v92 = vrcp.pop %v90
    %v93 = vmul.f32 %v89, %v91
    %v94 = vmul.f32 %v90, %v92
    %v95 = vsub.f32 2.0, %v93
    %v96 = vsub.f32 2.0, %v94
    %v97 = vmul.f32 %v91, %v95
    %v98 = vmul.f32 %v92, %v96
    %v99 = vmul.f32 %v87, %v97
    %v100 = vmul.f32 %v88, %v98
    %v101 = vadd.f32 %v83, %v99
    %v102 = vadd.f32 %v84, %v100
    %v103 = vld [vmem:[#allocation2] sm:$0xff]
    %v104 = vsel %vm64, %v101, 0.0
    %v105 = vsel %vm64, %v102, 0.0
    %v106 = vadd.f32 %v104, %v105
    %v107 = vadd.f32 %v103, %v106
    %108 = vst.msk [vmem:[#allocation2] sm:$0xff] %vm64, %v107
    // Predicated region
    $region22: #{tpu_custom_call.1} parent=1 // pred_check
      %p109 = pneg %p52
    $region23: #{tpu_custom_call.1} parent=1 // pred_check_branch
      %111 = sbr.rel (%p109) target = $region25
    $region24: #{tpu_custom_call.1} parent=1 // pred_region
      %v112 = vld [vmem:[#allocation2] sm:$0xff]
      %v113 = vsel %vm64, %v112, 0.0
      %114 = vadd.xlane.f32.xlu0 %v113
      %v115 = vpop.xlane.xlu0 %114
      %v116 = vrot.slane %v115, 4
      %v117 = vadd.f32 %v115, %v116
      %v118 = vrot.slane %v117, 2
      %v119 = vadd.f32 %v117, %v118
      %v120 = vrot.slane %v119, 1
      %v121 = vadd.f32 %v119, %v120
      %s122 = vtos %v121
      %v123 = vstv %s122
      %v124 = vadd.f32 %v123, 0.0
      %125 = vst [vmem:[#allocation8] sm:$0xff] %v124
    $region25: #{tpu_custom_call.1} parent=1 // pred_fallthru
      _
    // Predicated region
    $region26: #{tpu_custom_call.1} parent=1 // pred_check
      _
    $region27: #{tpu_custom_call.1} parent=1 // pred_check_branch
      %127 = sbr.rel (0) target = $region29
    $region28: #{tpu_custom_call.1} parent=1 // pred_region
      %s129 = ssub.s32 128, 128
      %130 = vsyncadd [#allocation5], %s129
      %s132 = sshll.u32 [#allocation8], 4
      %s133 = int_to_ptr.vmem [resolvable:$true] %s132
      %135 = dma.vmem_to_hbm [thread:$0]  %s133, 128, %s2, [#allocation5]
    $region29: #{tpu_custom_call.1} parent=1 // pred_fallthru
      _
    // Predicated region
    $region30: #{tpu_custom_call.1} parent=1 // pred_check
      _
    $region31: #{tpu_custom_call.1} parent=1 // pred_check_branch
      %137 = sbr.rel (0) target = $region33
    $region32: #{tpu_custom_call.1} parent=1 // pred_region
      %138 = dma.done [#allocation5], 128
    $region33: #{tpu_custom_call.1} parent=1 // pred_fallthru
      _
    %139 = vsyncpa [#allocation4], 1
    %140 = vsyncpa [#allocation7], 1
    %141 = vsyncpa [#allocation5], 1

</llo_original>
